<compile_context>
chip_gen: v5e
topology: v5e:2x2
jax: 0.10.0
libtpu: 0.0.40
codegen_flags: <defaults>
</compile_context>

<pallas_src>
import functools

import jax
import jax.numpy as jnp
from jax import lax
from jax.experimental import pallas as pl
from jax.experimental.pallas import tpu as pltpu

_LANE = 128
_SUBLANE = 8
_MIB = 1024 * 1024


def _round_up(x, m):
    return (x + m - 1) // m * m


def _gelu(x, approximate):
    if approximate:
        # tanh approximation -> transcendental goes to the EUP slot (nearly free)
        c = 0.7978845608028654  # sqrt(2/pi)
        return 0.5 * x * (1.0 + jnp.tanh(c * (x + 0.044715 * x * x * x)))
    # exact GELU (matches torch.nn.GELU() default): 0.5*x*(1+erf(x/sqrt(2)))
    return 0.5 * x * (1.0 + lax.erf(x * 0.7071067811865476))


# --------------------------------------------------------------------------
# Kernels
# --------------------------------------------------------------------------
def _mlp_kernel_no_hidden(x_ref, w_in_ref, b_in_ref, w_out_ref, b_out_ref,
                          o_ref, *, compute_dtype, approximate):
    h = jnp.dot(x_ref[...], w_in_ref[...], preferred_element_type=jnp.float32)
    h = _gelu(h + b_in_ref[...], approximate)
    o = jnp.dot(h.astype(compute_dtype), w_out_ref[...],
                preferred_element_type=jnp.float32) + b_out_ref[...]
    o_ref[...] = o.astype(o_ref.dtype)


def _mlp_kernel_resident(x_ref, w_in_ref, b_in_ref, w_hid_ref, b_hid_ref,
                         w_out_ref, b_out_ref, o_ref, *,
                         n_hidden, compute_dtype, approximate):
    h = jnp.dot(x_ref[...], w_in_ref[...], preferred_element_type=jnp.float32)
    h = _gelu(h + b_in_ref[...], approximate)

    def layer(i, h):
        z = jnp.dot(h.astype(compute_dtype), w_hid_ref[i],
                    preferred_element_type=jnp.float32)
        return _gelu(z + b_hid_ref[i], approximate)     # b_hid[i] is [1, d_h_p]

    if n_hidden <= 4:
        # short fixed trip count: static unroll (full LLO scheduler visibility)
        for i in range(n_hidden):
            h = layer(i, h)
    else:
        # deep stacks: bounded code size; unroll=2 keeps next-layer work visible
        h = lax.fori_loop(0, n_hidden, layer, h, unroll=2)

    o = jnp.dot(h.astype(compute_dtype), w_out_ref[...],
                preferred_element_type=jnp.float32) + b_out_ref[...]
    o_ref[...] = o.astype(o_ref.dtype)


def _mlp_kernel_stream(x_ref, w_in_ref, b_in_ref, w_hid_ref, b_hid_ref,
                       w_out_ref, b_out_ref, o_ref, h_scr, *,
                       compute_dtype, approximate):
    # grid = (row_tiles, n_hidden); hidden activation carried in VMEM scratch
    l = pl.program_id(1)

    @pl.when(l == 0)
    def _():
        h0 = jnp.dot(x_ref[...], w_in_ref[...],
                     preferred_element_type=jnp.float32)
        h_scr[...] = _gelu(h0 + b_in_ref[...], approximate)

    z = jnp.dot(h_scr[...].astype(compute_dtype), w_hid_ref[0],
                preferred_element_type=jnp.float32)
    h_scr[...] = _gelu(z + b_hid_ref[0], approximate)

    @pl.when(l == pl.num_programs(1) - 1)
    def _():
        o = jnp.dot(h_scr[...].astype(compute_dtype), w_out_ref[...],
                    preferred_element_type=jnp.float32) + b_out_ref[...]
        o_ref[...] = o.astype(o_ref.dtype)


# --------------------------------------------------------------------------
# Parameter preparation (pad + cast ONCE, not per forward call)
# --------------------------------------------------------------------------
def prepare_mlp_params(params, compute_dtype=jnp.bfloat16):
    """Pad feature dims to lane multiples and cast weights to the MXU dtype.

    Zero-padding is numerically exact: padded weight rows/cols and biases are
    0 and GELU(0) = 0, so padded lanes stay 0 through the stack.
    """
    w_in, b_in = params["w_in"], params["b_in"]
    w_hid, b_hid = params["w_hid"], params["b_hid"]
    w_out, b_out = params["w_out"], params["b_out"]

    d_in, d_hidden = w_in.shape
    d_out = w_out.shape[1]
    n_hidden = w_hid.shape[0]

    d_in_p = _round_up(d_in, _LANE)
    d_h_p = _round_up(d_hidden, _LANE)
    d_out_p = _round_up(d_out, _LANE)

    f32 = jnp.float32
    w_in_p = (jnp.zeros((d_in_p, d_h_p), f32)
              .at[:d_in, :d_hidden].set(w_in).astype(compute_dtype))
    b_in_p = jnp.zeros((1, d_h_p), f32).at[:, :d_hidden].set(b_in.reshape(1, -1))
    w_out_p = (jnp.zeros((d_h_p, d_out_p), f32)
               .at[:d_hidden, :d_out].set(w_out).astype(compute_dtype))
    b_out_p = jnp.zeros((1, d_out_p), f32).at[:, :d_out].set(b_out.reshape(1, -1))

    if n_hidden > 0:
        w_hid_p = (jnp.zeros((n_hidden, d_h_p, d_h_p), f32)
                   .at[:, :d_hidden, :d_hidden].set(w_hid).astype(compute_dtype))
        b_hid_p = (jnp.zeros((n_hidden, 1, d_h_p), f32)
                   .at[:, 0, :d_hidden].set(b_hid.reshape(n_hidden, -1)))
    else:
        w_hid_p = None
        b_hid_p = None

    return dict(
        w_in=w_in_p, b_in=b_in_p, w_hid=w_hid_p, b_hid=b_hid_p,
        w_out=w_out_p, b_out=b_out_p,
        dims=dict(d_in=d_in, d_hidden=d_hidden, d_out=d_out, n_hidden=n_hidden,
                  d_in_p=d_in_p, d_h_p=d_h_p, d_out_p=d_out_p),
        compute_dtype=compute_dtype,
    )


def _vmem_budget_bytes():
    """Per-generation VMEM budget (physical capacity minus headroom)."""
    try:
        cap = int(pltpu.get_tpu_info().vmem_capacity_bytes)
    except Exception:
        cap = 64 * _MIB   # conservative (v7x-sized) fallback
    return max(cap - 16 * _MIB, 32 * _MIB)


# --------------------------------------------------------------------------
# Forward
# --------------------------------------------------------------------------
def mlp_forward(x, prepared, *, tm=None, gelu_approximate=False,
                force_stream=False, out_dtype=None):
    """x: [N, d_in]. `prepared`: output of prepare_mlp_params (raw params OK too)."""
    if "dims" not in prepared:
        prepared = prepare_mlp_params(prepared)

    dims = prepared["dims"]
    compute_dtype = prepared["compute_dtype"]
    d_in, d_out = dims["d_in"], dims["d_out"]
    n_hidden = dims["n_hidden"]
    d_in_p, d_h_p, d_out_p = dims["d_in_p"], dims["d_h_p"], dims["d_out_p"]

    N = x.shape[0]
    out_dtype = x.dtype if out_dtype is None else out_dtype
    out_isz = jnp.dtype(out_dtype).itemsize
    wbytes = jnp.dtype(compute_dtype).itemsize

    vmem_budget = _vmem_budget_bytes()

    # ---- row tile selection --------------------------------------------
    if tm is None:
        # bigger tiles on v5e/v6e (128 MiB VMEM), tighter on v7x (64 MiB)
        tm = 512 if vmem_budget >= 96 * _MIB else 256
    tm_eff = min(_round_up(tm, _SUBLANE), _round_up(N, _SUBLANE))
    n_pad = _round_up(N, tm_eff)
    # keep >= 2 row tiles when possible so the "parallel" axis can be split
    # across two TensorCores (v7x); costs one extra (~0.35us) step elsewhere.
    while N > _LANE and n_pad // tm_eff < 2 and tm_eff > _LANE:
        tm_eff = max(_LANE, _round_up(tm_eff // 2, _SUBLANE))
        n_pad = _round_up(N, tm_eff)
    n_row_tiles = n_pad // tm_eff

    # ---- x padded directly in the compute dtype (halves x DMA / VMEM) ---
    x_p = (jnp.zeros((n_pad, d_in_p), compute_dtype)
           .at[:N, :d_in].set(x.astype(compute_dtype)))

    # ---- VMEM accounting & resident-vs-stream decision -------------------
    tile_bytes = 2 * tm_eff * d_in_p * wbytes + 2 * tm_eff * d_out_p * out_isz
    act_bytes = 2 * tm_eff * d_h_p * 4                      # f32 h intermediates
    w_const_core = (d_in_p * d_h_p + d_h_p * d_out_p) * wbytes + (d_h_p + d_out_p) * 4
    w_hid_bytes = n_hidden * (d_h_p * d_h_p * wbytes + d_h_p * 4)
    hid_stream_bytes = 2 * (d_h_p * d_h_p * wbytes + d_h_p * 4)  # double-buffered layer
    h_scratch_bytes = tm_eff * d_h_p * 4

    resident_need = w_const_core + w_hid_bytes + tile_bytes + act_bytes
    use_stream = (n_hidden >= 1) and (force_stream or resident_need > vmem_budget)

    # ---- cost estimate ----------------------------------------------------
    flops = 2 * n_pad * (d_in_p * d_h_p + n_hidden * d_h_p * d_h_p + d_h_p * d_out_p)
    trans = n_pad * d_h_p * (n_hidden + 1)

    def _run(single_buffer_weights):
        def const_spec(shape, index_map):
            # grid-invariant operand: single-buffer it (no benefit from double
            # buffering, halves its VMEM footprint)
            if single_buffer_weights:
                return pl.BlockSpec(shape, index_map, pipeline_mode=pl.Buffered(1))
            return pl.BlockSpec(shape, index_map)

        scratch = ()
        if n_hidden == 0:
            kernel = functools.partial(_mlp_kernel_no_hidden,
                                       compute_dtype=compute_dtype,
                                       approximate=gelu_approximate)
            grid = (n_row_tiles,)
            in_specs = [
                pl.BlockSpec((tm_eff, d_in_p), lambda i: (i, 0)),
                const_spec((d_in_p, d_h_p), lambda i: (0, 0)),
                const_spec((1, d_h_p), lambda i: (0, 0)),
                const_spec((d_h_p, d_out_p), lambda i: (0, 0)),
                const_spec((1, d_out_p), lambda i: (0, 0)),
            ]
            out_specs = pl.BlockSpec((tm_eff, d_out_p), lambda i: (i, 0))
            args = (x_p, prepared["w_in"], prepared["b_in"],
                    prepared["w_out"], prepared["b_out"])
            dim_sem = ("parallel",)
            w_const_bytes = w_const_core
            hid_extra = 0
            bytes_accessed = (n_pad * d_in_p * wbytes + n_pad * d_out_p * out_isz
                              + w_const_core)
        elif not use_stream:
            kernel = functools.partial(_mlp_kernel_resident, n_hidden=n_hidden,
                                       compute_dtype=compute_dtype,
                                       approximate=gelu_approximate)
            grid = (n_row_tiles,)
            in_specs = [
                pl.BlockSpec((tm_eff, d_in_p), lambda i: (i, 0)),
                const_spec((d_in_p, d_h_p), lambda i: (0, 0)),
                const_spec((1, d_h_p), lambda i: (0, 0)),
                const_spec((n_hidden, d_h_p, d_h_p), lambda i: (0, 0, 0)),
                const_spec((n_hidden, 1, d_h_p), lambda i: (0, 0, 0)),
                const_spec((d_h_p, d_out_p), lambda i: (0, 0)),
                const_spec((1, d_out_p), lambda i: (0, 0)),
            ]
            out_specs = pl.BlockSpec((tm_eff, d_out_p), lambda i: (i, 0))
            args = (x_p, prepared["w_in"], prepared["b_in"],
                    prepared["w_hid"], prepared["b_hid"],
                    prepared["w_out"], prepared["b_out"])
            dim_sem = ("parallel",)
            w_const_bytes = w_const_core + w_hid_bytes
            hid_extra = 0
            bytes_accessed = (n_pad * d_in_p * wbytes + n_pad * d_out_p * out_isz
                              + w_const_core + w_hid_bytes)
        else:
            # stream w_hid per layer along a second ("arbitrary") grid axis;
            # h carried across it in VMEM scratch, output stored on last step.
            kernel = functools.partial(_mlp_kernel_stream,
                                       compute_dtype=compute_dtype,
                                       approximate=gelu_approximate)
            grid = (n_row_tiles, n_hidden)
            in_specs = [
                pl.BlockSpec((tm_eff, d_in_p), lambda i, l: (i, 0)),
                const_spec((d_in_p, d_h_p), lambda i, l: (0, 0)),
                const_spec((1, d_h_p), lambda i, l: (0, 0)),
                pl.BlockSpec((1, d_h_p, d_h_p), lambda i, l: (l, 0, 0)),  # streamed
                pl.BlockSpec((1, 1, d_h_p), lambda i, l: (l, 0, 0)),      # streamed
                const_spec((d_h_p, d_out_p), lambda i, l: (0, 0)),
                const_spec((1, d_out_p), lambda i, l: (0, 0)),
            ]
            out_specs = pl.BlockSpec((tm_eff, d_out_p), lambda i, l: (i, 0))
            args = (x_p, prepared["w_in"], prepared["b_in"],
                    prepared["w_hid"], prepared["b_hid"],
                    prepared["w_out"], prepared["b_out"])
            scratch = (pltpu.VMEM((tm_eff, d_h_p), jnp.float32),)
            dim_sem = ("parallel", "arbitrary")
            w_const_bytes = w_const_core
            hid_extra = hid_stream_bytes + h_scratch_bytes
            bytes_accessed = (n_pad * d_in_p * wbytes + n_pad * d_out_p * out_isz
                              + w_const_core + n_row_tiles * w_hid_bytes)

        w_buf_factor = 1 if single_buffer_weights else 2
        need = tile_bytes + act_bytes + hid_extra + w_buf_factor * w_const_bytes
        vmem_limit = int(min(vmem_budget, max(need + need // 2, 32 * _MIB)))

        cost = pl.CostEstimate(flops=int(flops), transcendentals=int(trans),
                               bytes_accessed=int(bytes_accessed))

        return pl.pallas_call(
            kernel,
            out_shape=jax.ShapeDtypeStruct((n_pad, d_out_p), out_dtype),
            grid_spec=pltpu.PrefetchScalarGridSpec(
                num_scalar_prefetch=0,
                grid=grid,
                in_specs=in_specs,
                out_specs=out_specs,
                scratch_shapes=list(scratch),
            ),
            compiler_params=pltpu.CompilerParams(
                dimension_semantics=dim_sem,
                vmem_limit_bytes=vmem_limit),
            cost_estimate=cost,
        )(*args)

    try:
        out_p = _run(single_buffer_weights=True)
    except Exception:
        # pipeline_mode=pl.Buffered(1) not accepted by this jax/Mosaic build;
        # fall back to default double-buffering of the resident operands.
        out_p = _run(single_buffer_weights=False)

    return out_p[:N, :d_out]


# --------------------------------------------------------------------------
# Reference & init (for the self-test)
# --------------------------------------------------------------------------
def init_mlp_params(key, d_in, d_hidden, d_out, n_dense_layers):
    """Deterministic synthetic init. Weights stored [in, out] (transposed vs.
    PyTorch's [out, in]) so the kernel computes x @ W + b. Biases are 1-D."""
    n_hidden = n_dense_layers - 2
    keys = jax.random.split(key, 2 * (n_hidden + 2))
    k_iter = iter(keys)

    def lin(k_w, k_b, fan_in, fan_out):
        bound = 1.0 / jnp.sqrt(fan_in)
        w = jax.random.uniform(k_w, (fan_in, fan_out), jnp.float32, -bound, bound)
        b = jax.random.uniform(k_b, (fan_out,), jnp.float32, -bound, bound)
        return w, b

    w_in, b_in = lin(next(k_iter), next(k_iter), d_in, d_hidden)
    w_hs, b_hs = [], []
    for _ in range(n_hidden):
        w, b = lin(next(k_iter), next(k_iter), d_hidden, d_hidden)
        w_hs.append(w)
        b_hs.append(b)
    w_out, b_out = lin(next(k_iter), next(k_iter), d_hidden, d_out)

    return dict(
        w_in=w_in, b_in=b_in,
        w_hid=jnp.stack(w_hs) if n_hidden > 0 else jnp.zeros((0, d_hidden, d_hidden), jnp.float32),
        b_hid=jnp.stack(b_hs) if n_hidden > 0 else jnp.zeros((0, d_hidden), jnp.float32),
        w_out=w_out, b_out=b_out,
    )


def mlp_reference(x, params):
    h = _gelu(x @ params["w_in"] + params["b_in"][None, :], approximate=False)
    for i in range(params["w_hid"].shape[0]):
        h = _gelu(h @ params["w_hid"][i] + params["b_hid"][i][None, :],
                  approximate=False)
    return h @ params["w_out"] + params["b_out"][None, :]


if __name__ == "__main__":
    # Small shapes consistent with the module: N=8 "tokens", d_in=16,
    # d_hidden=32, d_out=16, n_dense_layers=3 (=> 1 hidden dense layer).
    d_in, d_hidden, d_out, n_dense_layers = 16, 32, 16, 3
    N = 8

    key = jax.random.PRNGKey(0)
    k_x, k_p = jax.random.split(key)
    x = jax.random.normal(k_x, (N, d_in), jnp.float32)
    params = init_mlp_params(k_p, d_in, d_hidden, d_out, n_dense_layers)
    ref = mlp_reference(x, params)

    # f32 compute path: tight check vs. the f32 reference (resident kernel)
    prep_f32 = prepare_mlp_params(params, compute_dtype=jnp.float32)
    out_f32 = jax.block_until_ready(mlp_forward(x, prep_f32))
    assert out_f32.shape == (N, d_out)
    assert jnp.allclose(out_f32, ref, atol=1e-5, rtol=1e-5), "f32 mismatch"

    # default bf16-MXU / f32-accumulate path (params padded+cast once)
    prep_bf16 = prepare_mlp_params(params, compute_dtype=jnp.bfloat16)
    out_bf16 = jax.block_until_ready(mlp_forward(x, prep_bf16))
    assert out_bf16.shape == (N, d_out)
    assert jnp.allclose(out_bf16, ref, atol=5e-2, rtol=5e-2), "bf16 mismatch"

    # streaming (per-layer w_hid DMA) path, exercised at small shape
    out_stream = jax.block_until_ready(mlp_forward(x, prep_f32, force_stream=True))
    assert jnp.allclose(out_stream, ref, atol=1e-5, rtol=1e-5), "stream mismatch"

    # tanh-approximate GELU (EUP) path, tolerance-gated
    out_approx = jax.block_until_ready(
        mlp_forward(x, prep_bf16, gelu_approximate=True))
    assert jnp.allclose(out_approx, ref, atol=5e-2, rtol=5e-2), "approx-GELU mismatch"

    # n_dense_layers == 2 (no hidden layers) -> dedicated kernel w/o w_hid refs
    params2 = init_mlp_params(k_p, d_in, d_hidden, d_out, 2)
    ref2 = mlp_reference(x, params2)
    prep2 = prepare_mlp_params(params2, compute_dtype=jnp.float32)
    out2 = jax.block_until_ready(mlp_forward(x, prep2))
    assert jnp.allclose(out2, ref2, atol=1e-5, rtol=1e-5), "no-hidden mismatch"

    print("KERNEL_OK")
</pallas_src>

<mosaic_0001>
module attributes {stable_mosaic.version = 11 : i64} {
  func.func @_mlp_kernel_resident(%arg0: i32, %arg1: memref<8x128xf32, #tpu.memory_space<vmem>>, %arg2: memref<128x128xf32, #tpu.memory_space<vmem>>, %arg3: memref<1x128xf32, #tpu.memory_space<vmem>>, %arg4: memref<1x128x128xf32, #tpu.memory_space<vmem>>, %arg5: memref<1x1x128xf32, #tpu.memory_space<vmem>>, %arg6: memref<128x128xf32, #tpu.memory_space<vmem>>, %arg7: memref<1x128xf32, #tpu.memory_space<vmem>>, %arg8: memref<8x128xf32, #tpu.memory_space<vmem>>) attributes {dimension_semantics = [#tpu.dimension_semantics<parallel>], iteration_bounds = array<i64: 1>, scalar_prefetch = 0 : i64, scratch_operands = 0 : i64, tpu.core_type = #tpu.core_type<tc>, window_params = [{transform_indices = @transform_0, window_bounds = array<i64: 8, 128>}, {pipeline_mode = #tpu.pipeline_mode<synchronous>, transform_indices = @transform_1, window_bounds = array<i64: 128, 128>}, {pipeline_mode = #tpu.pipeline_mode<synchronous>, transform_indices = @transform_2, window_bounds = array<i64: 1, 128>}, {pipeline_mode = #tpu.pipeline_mode<synchronous>, transform_indices = @transform_3, window_bounds = array<i64: 1, 128, 128>}, {pipeline_mode = #tpu.pipeline_mode<synchronous>, transform_indices = @transform_4, window_bounds = array<i64: 1, 1, 128>}, {pipeline_mode = #tpu.pipeline_mode<synchronous>, transform_indices = @transform_5, window_bounds = array<i64: 128, 128>}, {pipeline_mode = #tpu.pipeline_mode<synchronous>, transform_indices = @transform_6, window_bounds = array<i64: 1, 128>}, {transform_indices = @transform_7, window_bounds = array<i64: 8, 128>}]} {
    %c0 = arith.constant 0 : index
    %c0_0 = arith.constant 0 : index
    %0 = vector.load %arg1[%c0, %c0_0] : memref<8x128xf32, #tpu.memory_space<vmem>>, vector<8x128xf32>
    %c0_1 = arith.constant 0 : index
    %c0_2 = arith.constant 0 : index
    %1 = vector.load %arg2[%c0_1, %c0_2] : memref<128x128xf32, #tpu.memory_space<vmem>>, vector<128x128xf32>
    %cst = arith.constant dense<0.000000e+00> : vector<8x128xf32>
    %2 = tpu.matmul %0, %1, %cst {dimension_numbers = #tpu.dot_dimension_numbers<[1], [0], [0], [1], [0, 0, 1, 1], [], []>} : vector<8x128xf32>, vector<128x128xf32>, vector<8x128xf32> -> vector<8x128xf32>
    %c0_3 = arith.constant 0 : index
    %c0_4 = arith.constant 0 : index
    %3 = vector.load %arg3[%c0_3, %c0_4] : memref<1x128xf32, #tpu.memory_space<vmem>>, vector<1x128xf32>
    %4 = vector.broadcast %3 : vector<1x128xf32> to vector<8x128xf32>
    %5 = arith.addf %2, %4 : vector<8x128xf32>
    %cst_5 = arith.constant 5.000000e-01 : f32
    %6 = vector.broadcast %cst_5 : f32 to vector<8x128xf32>
    %7 = arith.mulf %6, %5 : vector<8x128xf32>
    %cst_6 = arith.constant 0.707106769 : f32
    %8 = vector.broadcast %cst_6 : f32 to vector<8x128xf32>
    %9 = arith.mulf %5, %8 : vector<8x128xf32>
    %10 = math.erf %9 : vector<8x128xf32>
    %cst_7 = arith.constant 1.000000e+00 : f32
    %11 = vector.broadcast %cst_7 : f32 to vector<8x128xf32>
    %12 = arith.addf %11, %10 : vector<8x128xf32>
    %13 = arith.mulf %7, %12 : vector<8x128xf32>
    %c0_8 = arith.constant 0 : index
    %c0_9 = arith.constant 0 : index
    %c0_10 = arith.constant 0 : index
    %14 = vector.load %arg4[%c0_8, %c0_9, %c0_10] : memref<1x128x128xf32, #tpu.memory_space<vmem>>, vector<1x128x128xf32>
    %15 = vector.shape_cast %14 : vector<1x128x128xf32> to vector<128x128xf32>
    %cst_11 = arith.constant dense<0.000000e+00> : vector<8x128xf32>
    %16 = tpu.matmul %13, %15, %cst_11 {dimension_numbers = #tpu.dot_dimension_numbers<[1], [0], [0], [1], [0, 0, 1, 1], [], []>} : vector<8x128xf32>, vector<128x128xf32>, vector<8x128xf32> -> vector<8x128xf32>
    %c0_12 = arith.constant 0 : index
    %c0_13 = arith.constant 0 : index
    %c0_14 = arith.constant 0 : index
    %17 = vector.load %arg5[%c0_12, %c0_13, %c0_14] : memref<1x1x128xf32, #tpu.memory_space<vmem>>, vector<1x1x128xf32>
    %18 = vector.shape_cast %17 : vector<1x1x128xf32> to vector<1x128xf32>
    %19 = vector.broadcast %18 : vector<1x128xf32> to vector<8x128xf32>
    %20 = arith.addf %16, %19 : vector<8x128xf32>
    %cst_15 = arith.constant 5.000000e-01 : f32
    %21 = vector.broadcast %cst_15 : f32 to vector<8x128xf32>
    %22 = arith.mulf %21, %20 : vector<8x128xf32>
    %cst_16 = arith.constant 0.707106769 : f32
    %23 = vector.broadcast %cst_16 : f32 to vector<8x128xf32>
    %24 = arith.mulf %20, %23 : vector<8x128xf32>
    %25 = math.erf %24 : vector<8x128xf32>
    %cst_17 = arith.constant 1.000000e+00 : f32
    %26 = vector.broadcast %cst_17 : f32 to vector<8x128xf32>
    %27 = arith.addf %26, %25 : vector<8x128xf32>
    %28 = arith.mulf %22, %27 : vector<8x128xf32>
    %c0_18 = arith.constant 0 : index
    %c0_19 = arith.constant 0 : index
    %29 = vector.load %arg6[%c0_18, %c0_19] : memref<128x128xf32, #tpu.memory_space<vmem>>, vector<128x128xf32>
    %cst_20 = arith.constant dense<0.000000e+00> : vector<8x128xf32>
    %30 = tpu.matmul %28, %29, %cst_20 {dimension_numbers = #tpu.dot_dimension_numbers<[1], [0], [0], [1], [0, 0, 1, 1], [], []>} : vector<8x128xf32>, vector<128x128xf32>, vector<8x128xf32> -> vector<8x128xf32>
    %c0_21 = arith.constant 0 : index
    %c0_22 = arith.constant 0 : index
    %31 = vector.load %arg7[%c0_21, %c0_22] : memref<1x128xf32, #tpu.memory_space<vmem>>, vector<1x128xf32>
    %32 = vector.broadcast %31 : vector<1x128xf32> to vector<8x128xf32>
    %33 = arith.addf %30, %32 : vector<8x128xf32>
    %c0_23 = arith.constant 0 : index
    %c0_24 = arith.constant 0 : index
    %34 = vector.load %arg8[%c0_23, %c0_24] : memref<8x128xf32, #tpu.memory_space<vmem>>, vector<8x128xf32>
    tpu.vector_store %arg8[%c0_23, %c0_24], %33 {strides = array<i32>} : memref<8x128xf32, #tpu.memory_space<vmem>>, vector<8x128xf32>,
    return
  }
  func.func @transform_0(%arg0: i32) -> (i32, i32) {
    %c0_i32 = arith.constant 0 : i32
    %c0_i32_0 = arith.constant 0 : i32
    return %arg0, %c0_i32 : i32, i32
  }
  func.func @transform_1(%arg0: i32) -> (i32, i32) {
    %c0_i32 = arith.constant 0 : i32
    %c0_i32_0 = arith.constant 0 : i32
    %c0_i32_1 = arith.constant 0 : i32
    return %c0_i32, %c0_i32_0 : i32, i32
  }
  func.func @transform_2(%arg0: i32) -> (i32, i32) {
    %c0_i32 = arith.constant 0 : i32
    %c0_i32_0 = arith.constant 0 : i32
    %c0_i32_1 = arith.constant 0 : i32
    return %c0_i32, %c0_i32_0 : i32, i32
  }
  func.func @transform_3(%arg0: i32) -> (i32, i32, i32) {
    %c0_i32 = arith.constant 0 : i32
    %c0_i32_0 = arith.constant 0 : i32
    %c0_i32_1 = arith.constant 0 : i32
    %c0_i32_2 = arith.constant 0 : i32
    return %c0_i32, %c0_i32_0, %c0_i32_1 : i32, i32, i32
  }
  func.func @transform_4(%arg0: i32) -> (i32, i32, i32) {
    %c0_i32 = arith.constant 0 : i32
    %c0_i32_0 = arith.constant 0 : i32
    %c0_i32_1 = arith.constant 0 : i32
    %c0_i32_2 = arith.constant 0 : i32
    return %c0_i32, %c0_i32_0, %c0_i32_1 : i32, i32, i32
  }
  func.func @transform_5(%arg0: i32) -> (i32, i32) {
    %c0_i32 = arith.constant 0 : i32
    %c0_i32_0 = arith.constant 0 : i32
    %c0_i32_1 = arith.constant 0 : i32
    return %c0_i32, %c0_i32_0 : i32, i32
  }
  func.func @transform_6(%arg0: i32) -> (i32, i32) {
    %c0_i32 = arith.constant 0 : i32
    %c0_i32_0 = arith.constant 0 : i32
    %c0_i32_1 = arith.constant 0 : i32
    return %c0_i32, %c0_i32_0 : i32, i32
  }
  func.func @transform_7(%arg0: i32) -> (i32, i32) {
    %c0_i32 = arith.constant 0 : i32
    %c0_i32_0 = arith.constant 0 : i32
    return %arg0, %c0_i32 : i32, i32
  }
}

module attributes {stable_mosaic.version = 11 : i64} {
  func.func @_mlp_kernel_resident(%arg0: i32, %arg1: memref<8x128xf32, #tpu.memory_space<vmem>>, %arg2: memref<128x128xf32, #tpu.memory_space<vmem>>, %arg3: memref<1x128xf32, #tpu.memory_space<vmem>>, %arg4: memref<1x128x128xf32, #tpu.memory_space<vmem>>, %arg5: memref<1x1x128xf32, #tpu.memory_space<vmem>>, %arg6: memref<128x128xf32, #tpu.memory_space<vmem>>, %arg7: memref<1x128xf32, #tpu.memory_space<vmem>>, %arg8: memref<8x128xf32, #tpu.memory_space<vmem>>) attributes {dimension_semantics = [#tpu.dimension_semantics<parallel>], iteration_bounds = array<i64: 1>, scalar_prefetch = 0 : i64, scratch_operands = 0 : i64, tpu.core_type = #tpu.core_type<tc>, window_params = [{transform_indices = @transform_0, window_bounds = array<i64: 8, 128>}, {pipeline_mode = #tpu.pipeline_mode<synchronous>, transform_indices = @transform_1, window_bounds = array<i64: 128, 128>}, {pipeline_mode = #tpu.pipeline_mode<synchronous>, transform_indices = @transform_2, window_bounds = array<i64: 1, 128>}, {pipeline_mode = #tpu.pipeline_mode<synchronous>, transform_indices = @transform_3, window_bounds = array<i64: 1, 128, 128>}, {pipeline_mode = #tpu.pipeline_mode<synchronous>, transform_indices = @transform_4, window_bounds = array<i64: 1, 1, 128>}, {pipeline_mode = #tpu.pipeline_mode<synchronous>, transform_indices = @transform_5, window_bounds = array<i64: 128, 128>}, {pipeline_mode = #tpu.pipeline_mode<synchronous>, transform_indices = @transform_6, window_bounds = array<i64: 1, 128>}, {transform_indices = @transform_7, window_bounds = array<i64: 8, 128>}]} {
    %c0 = arith.constant 0 : index
    %c0_0 = arith.constant 0 : index
    %0 = vector.load %arg1[%c0, %c0_0] : memref<8x128xf32, #tpu.memory_space<vmem>>, vector<8x128xf32>
    %c0_1 = arith.constant 0 : index
    %c0_2 = arith.constant 0 : index
    %1 = vector.load %arg2[%c0_1, %c0_2] : memref<128x128xf32, #tpu.memory_space<vmem>>, vector<128x128xf32>
    %cst = arith.constant dense<0.000000e+00> : vector<8x128xf32>
    %2 = tpu.matmul %0, %1, %cst {dimension_numbers = #tpu.dot_dimension_numbers<[1], [0], [0], [1], [0, 0, 1, 1], [], []>} : vector<8x128xf32>, vector<128x128xf32>, vector<8x128xf32> -> vector<8x128xf32>
    %c0_3 = arith.constant 0 : index
    %c0_4 = arith.constant 0 : index
    %3 = vector.load %arg3[%c0_3, %c0_4] : memref<1x128xf32, #tpu.memory_space<vmem>>, vector<1x128xf32>
    %4 = vector.broadcast %3 : vector<1x128xf32> to vector<8x128xf32>
    %5 = arith.addf %2, %4 : vector<8x128xf32>
    %cst_5 = arith.constant 5.000000e-01 : f32
    %6 = vector.broadcast %cst_5 : f32 to vector<8x128xf32>
    %7 = arith.mulf %6, %5 : vector<8x128xf32>
    %cst_6 = arith.constant 0.707106769 : f32
    %8 = vector.broadcast %cst_6 : f32 to vector<8x128xf32>
    %9 = arith.mulf %5, %8 : vector<8x128xf32>
    %10 = math.erf %9 : vector<8x128xf32>
    %cst_7 = arith.constant 1.000000e+00 : f32
    %11 = vector.broadcast %cst_7 : f32 to vector<8x128xf32>
    %12 = arith.addf %11, %10 : vector<8x128xf32>
    %13 = arith.mulf %7, %12 : vector<8x128xf32>
    %c0_8 = arith.constant 0 : index
    %c0_9 = arith.constant 0 : index
    %c0_10 = arith.constant 0 : index
    %14 = vector.load %arg4[%c0_8, %c0_9, %c0_10] : memref<1x128x128xf32, #tpu.memory_space<vmem>>, vector<1x128x128xf32>
    %15 = vector.shape_cast %14 : vector<1x128x128xf32> to vector<128x128xf32>
    %cst_11 = arith.constant dense<0.000000e+00> : vector<8x128xf32>
    %16 = tpu.matmul %13, %15, %cst_11 {dimension_numbers = #tpu.dot_dimension_numbers<[1], [0], [0], [1], [0, 0, 1, 1], [], []>} : vector<8x128xf32>, vector<128x128xf32>, vector<8x128xf32> -> vector<8x128xf32>
    %c0_12 = arith.constant 0 : index
    %c0_13 = arith.constant 0 : index
    %c0_14 = arith.constant 0 : index
    %17 = vector.load %arg5[%c0_12, %c0_13, %c0_14] : memref<1x1x128xf32, #tpu.memory_space<vmem>>, vector<1x1x128xf32>
    %18 = vector.shape_cast %17 : vector<1x1x128xf32> to vector<1x128xf32>
    %19 = vector.broadcast %18 : vector<1x128xf32> to vector<8x128xf32>
    %20 = arith.addf %16, %19 : vector<8x128xf32>
    %cst_15 = arith.constant 5.000000e-01 : f32
    %21 = vector.broadcast %cst_15 : f32 to vector<8x128xf32>
    %22 = arith.mulf %21, %20 : vector<8x128xf32>
    %cst_16 = arith.constant 0.707106769 : f32
    %23 = vector.broadcast %cst_16 : f32 to vector<8x128xf32>
    %24 = arith.mulf %20, %23 : vector<8x128xf32>
    %25 = math.erf %24 : vector<8x128xf32>
    %cst_17 = arith.constant 1.000000e+00 : f32
    %26 = vector.broadcast %cst_17 : f32 to vector<8x128xf32>
    %27 = arith.addf %26, %25 : vector<8x128xf32>
    %28 = arith.mulf %22, %27 : vector<8x128xf32>
    %c0_18 = arith.constant 0 : index
    %c0_19 = arith.constant 0 : index
    %29 = vector.load %arg6[%c0_18, %c0_19] : memref<128x128xf32, #tpu.memory_space<vmem>>, vector<128x128xf32>
    %cst_20 = arith.constant dense<0.000000e+00> : vector<8x128xf32>
    %30 = tpu.matmul %28, %29, %cst_20 {dimension_numbers = #tpu.dot_dimension_numbers<[1], [0], [0], [1], [0, 0, 1, 1], [], []>} : vector<8x128xf32>, vector<128x128xf32>, vector<8x128xf32> -> vector<8x128xf32>
    %c0_21 = arith.constant 0 : index
    %c0_22 = arith.constant 0 : index
    %31 = vector.load %arg7[%c0_21, %c0_22] : memref<1x128xf32, #tpu.memory_space<vmem>>, vector<1x128xf32>
    %32 = vector.broadcast %31 : vector<1x128xf32> to vector<8x128xf32>
    %33 = arith.addf %30, %32 : vector<8x128xf32>
    %c0_23 = arith.constant 0 : index
    %c0_24 = arith.constant 0 : index
    %34 = vector.load %arg8[%c0_23, %c0_24] : memref<8x128xf32, #tpu.memory_space<vmem>>, vector<8x128xf32>
    tpu.vector_store %arg8[%c0_23, %c0_24], %33 {strides = array<i32>} : memref<8x128xf32, #tpu.memory_space<vmem>>, vector<8x128xf32>,
    return
  }
  func.func @transform_0(%arg0: i32) -> (i32, i32) {
    %c0_i32 = arith.constant 0 : i32
    %c0_i32_0 = arith.constant 0 : i32
    return %arg0, %c0_i32 : i32, i32
  }
  func.func @transform_1(%arg0: i32) -> (i32, i32) {
    %c0_i32 = arith.constant 0 : i32
    %c0_i32_0 = arith.constant 0 : i32
    %c0_i32_1 = arith.constant 0 : i32
    return %c0_i32, %c0_i32_0 : i32, i32
  }
  func.func @transform_2(%arg0: i32) -> (i32, i32) {
    %c0_i32 = arith.constant 0 : i32
    %c0_i32_0 = arith.constant 0 : i32
    %c0_i32_1 = arith.constant 0 : i32
    return %c0_i32, %c0_i32_0 : i32, i32
  }
  func.func @transform_3(%arg0: i32) -> (i32, i32, i32) {
    %c0_i32 = arith.constant 0 : i32
    %c0_i32_0 = arith.constant 0 : i32
    %c0_i32_1 = arith.constant 0 : i32
    %c0_i32_2 = arith.constant 0 : i32
    return %c0_i32, %c0_i32_0, %c0_i32_1 : i32, i32, i32
  }
  func.func @transform_4(%arg0: i32) -> (i32, i32, i32) {
    %c0_i32 = arith.constant 0 : i32
    %c0_i32_0 = arith.constant 0 : i32
    %c0_i32_1 = arith.constant 0 : i32
    %c0_i32_2 = arith.constant 0 : i32
    return %c0_i32, %c0_i32_0, %c0_i32_1 : i32, i32, i32
  }
  func.func @transform_5(%arg0: i32) -> (i32, i32) {
    %c0_i32 = arith.constant 0 : i32
    %c0_i32_0 = arith.constant 0 : i32
    %c0_i32_1 = arith.constant 0 : i32
    return %c0_i32, %c0_i32_0 : i32, i32
  }
  func.func @transform_6(%arg0: i32) -> (i32, i32) {
    %c0_i32 = arith.constant 0 : i32
    %c0_i32_0 = arith.constant 0 : i32
    %c0_i32_1 = arith.constant 0 : i32
    return %c0_i32, %c0_i32_0 : i32, i32
  }
  func.func @transform_7(%arg0: i32) -> (i32, i32) {
    %c0_i32 = arith.constant 0 : i32
    %c0_i32_0 = arith.constant 0 : i32
    return %arg0, %c0_i32 : i32, i32
  }
}

</mosaic_0001>

<llo_original>
// kernel: tpu_custom_call.1
$region0: #{tpu_custom_call.1}
  #allocation0 [shape = 'u32[]', space=smem, size = 0x4, offset = 0x4, fixed_abs, tag = 'smem constant byte address 0x4 - core index']
  #allocation1 [shape = 'u32[72,128]{1,0:T(1,128)}', space=vmem, size = 0x9000, scoped, tag = 'internal scratch']
  %s0 = inlined_call_operand.hbm [shape: f32[8,128], index: 0, kind: input, shape index: {}]
  %s1 = inlined_call_operand.hbm [shape: f32[128,128], index: 1, kind: input, shape index: {}]
  %s2 = inlined_call_operand.vmem [shape: f32[1,128], index: 2, kind: input, shape index: {}]
  %s3 = inlined_call_operand.hbm [shape: f32[1,128,128], index: 3, kind: input, shape index: {}]
  %s4 = inlined_call_operand.vmem [shape: f32[1,1,128], index: 4, kind: input, shape index: {}]
  %s5 = inlined_call_operand.hbm [shape: f32[128,128], index: 5, kind: input, shape index: {}]
  %s6 = inlined_call_operand.vmem [shape: f32[1,128], index: 6, kind: input, shape index: {}]
  %s7 = inlined_call_operand.hbm [shape: f32[8,128], index: 7, kind: output, shape index: {}]
  %s8 = sld [smem:[#allocation0]]
  $region54: #{tpu_custom_call.1} parent=0
    _
  %s10 = ssub.s32 1, %s8
  %s11 = scalar_select 0, %s10, %s8
  $region1: #{tpu_custom_call.1} parent=0
    #allocation2 [shape = 'u8[4096]{0}', space=vmem, size = 0x1000, scoped, tag = 'input window, operand 0, single buffered']
    #allocation3 [shape = 's32[1]{0}', space=sflag, size = 0x4, scoped, tag = 'scoped memory for tpu_custom_call.1']
    #allocation4 [shape = 's32[1]{0}', space=sflag, size = 0x4, scoped, tag = 'scoped memory for tpu_custom_call.1']
    #allocation5 [shape = 'u8[65536]{0}', space=vmem, size = 0x10000, scoped, tag = 'input window, operand 1, single buffered']
    #allocation6 [shape = 's32[1]{0}', space=sflag, size = 0x4, scoped, tag = 'scoped memory for tpu_custom_call.1']
    #allocation7 [shape = 'u8[65536]{0}', space=vmem, size = 0x10000, scoped, tag = 'input window, operand 3, single buffered']
    #allocation8 [shape = 'u8[65536]{0}', space=vmem, size = 0x10000, scoped, tag = 'input window, operand 5, single buffered']
    #allocation9 [shape = 's32[1]{0}', space=sflag, size = 0x4, scoped, tag = 'scoped memory for tpu_custom_call.1']
    #allocation10 [shape = 'u8[4096]{0}', space=vmem, size = 0x1000, scoped, tag = 'output window, operand 0, single buffered']
    %12 = vsyncpa [#allocation3], 0
    %13 = vsyncpa [#allocation6], 0
    %14 = vsyncpa [#allocation9], 0
    %15 = vsyncpa [#allocation4], 0
    // Predicated region
    $region2: #{tpu_custom_call.1} parent=1 // pred_check
      _
    $region3: #{tpu_custom_call.1} parent=1 // pred_check_branch
      %17 = sbr.rel (0) target = $region5
    $region4: #{tpu_custom_call.1} parent=1 // pred_region
      %19 = vsyncadd [#allocation3], 0
      %s21 = sshll.u32 %s0, 4
      %s22 = int_to_ptr.hbm [resolvable:$true] %s21
      %s23 = sshll.u32 [#allocation2], 4
      %s24 = int_to_ptr.vmem [resolvable:$true] %s23
      %26 = dma.hbm_to_vmem [thread:$0]  %s22, 128, %s24, [#allocation3]
    $region5: #{tpu_custom_call.1} parent=1 // pred_fallthru
      _
    // Predicated region
    $region6: #{tpu_custom_call.1} parent=1 // pred_check
      _
    $region7: #{tpu_custom_call.1} parent=1 // pred_check_branch
      %28 = sbr.rel (0) target = $region9
    $region8: #{tpu_custom_call.1} parent=1 // pred_region
      %30 = vsyncadd [#allocation6], 0
      %s31 = sshll.u32 %s1, 4
      %s32 = int_to_ptr.hbm [resolvable:$true] %s31
      %s33 = sshll.u32 [#allocation5], 4
      %s34 = int_to_ptr.vmem [resolvable:$true] %s33
      %39 = dma.hbm_to_vmem [thread:$0]  %s32, 2048, %s34, [#allocation6], 128, 128, 8
    $region9: #{tpu_custom_call.1} parent=1 // pred_fallthru
      _
    // Predicated region
    $region10: #{tpu_custom_call.1} parent=1 // pred_check
      _
    $region11: #{tpu_custom_call.1} parent=1 // pred_check_branch
      %41 = sbr.rel (0) target = $region13
    $region12: #{tpu_custom_call.1} parent=1 // pred_region
      _
    $region13: #{tpu_custom_call.1} parent=1 // pred_fallthru
      _
    // Predicated region
    $region14: #{tpu_custom_call.1} parent=1 // pred_check
      _
    $region15: #{tpu_custom_call.1} parent=1 // pred_check_branch
      %43 = sbr.rel (0) target = $region17
    $region16: #{tpu_custom_call.1} parent=1 // pred_region
      %45 = vsyncadd [#allocation6], 0
      %s46 = sshll.u32 %s3, 4
      %s47 = int_to_ptr.hbm [resolvable:$true] %s46
      %s48 = sshll.u32 [#allocation7], 4
      %s49 = int_to_ptr.vmem [resolvable:$true] %s48
      %54 = dma.hbm_to_vmem [thread:$0]  %s47, 2048, %s49, [#allocation6], 128, 128, 8
    $region17: #{tpu_custom_call.1} parent=1 // pred_fallthru
      _
    // Predicated region
    $region18: #{tpu_custom_call.1} parent=1 // pred_check
      _
    $region19: #{tpu_custom_call.1} parent=1 // pred_check_branch
      %56 = sbr.rel (0) target = $region21
    $region20: #{tpu_custom_call.1} parent=1 // pred_region
      _
    $region21: #{tpu_custom_call.1} parent=1 // pred_fallthru
      _
    // Predicated region
    $region22: #{tpu_custom_call.1} parent=1 // pred_check
      _
    $region23: #{tpu_custom_call.1} parent=1 // pred_check_branch
      %58 = sbr.rel (0) target = $region25
    $region24: #{tpu_custom_call.1} parent=1 // pred_region
      %60 = vsyncadd [#allocation9], 0
      %s61 = sshll.u32 %s5, 4
      %s62 = int_to_ptr.hbm [resolvable:$true] %s61
      %s63 = sshll.u32 [#allocation8], 4
      %s64 = int_to_ptr.vmem [resolvable:$true] %s63
      %69 = dma.hbm_to_vmem [thread:$0]  %s62, 2048, %s64, [#allocation9], 128, 128, 8
    $region25: #{tpu_custom_call.1} parent=1 // pred_fallthru
      _
    // Predicated region
    $region26: #{tpu_custom_call.1} parent=1 // pred_check
      _
    $region27: #{tpu_custom_call.1} parent=1 // pred_check_branch
      %71 = sbr.rel (0) target = $region29
    $region28: #{tpu_custom_call.1} parent=1 // pred_region
      _
    $region29: #{tpu_custom_call.1} parent=1 // pred_fallthru
      _
    // Predicated region
    $region30: #{tpu_custom_call.1} parent=1 // pred_check
      _
    $region31: #{tpu_custom_call.1} parent=1 // pred_check_branch
      %73 = sbr.rel (0) target = $region33
    $region32: #{tpu_custom_call.1} parent=1 // pred_region
      %75 = dma.done [#allocation3], 128
    $region33: #{tpu_custom_call.1} parent=1 // pred_fallthru
      _
    // Predicated region
    $region34: #{tpu_custom_call.1} parent=1 // pred_check
      _
    $region35: #{tpu_custom_call.1} parent=1 // pred_check_branch
      %77 = sbr.rel (0) target = $region37
    $region36: #{tpu_custom_call.1} parent=1 // pred_region
      %79 = dma.done [#allocation6], 2048
    $region37: #{tpu_custom_call.1} parent=1 // pred_fallthru
      _
    // Predicated region
    $region38: #{tpu_custom_call.1} parent=1 // pred_check
      _
    $region39: #{tpu_custom_call.1} parent=1 // pred_check_branch
      %81 = sbr.rel (0) target = $region41
    $region40: #{tpu_custom_call.1} parent=1 // pred_region
      %83 = dma.done [#allocation6], 2048
    $region41: #{tpu_custom_call.1} parent=1 // pred_fallthru
      _
    // Predicated region
    $region42: #{tpu_custom_call.1} parent=1 // pred_check
      _
    $region43: #{tpu_custom_call.1} parent=1 // pred_check_branch
      %85 = sbr.rel (0) target = $region45
    $region44: #{tpu_custom_call.1} parent=1 // pred_region
      %87 = dma.done [#allocation9], 2048
    $region45: #{tpu_custom_call.1} parent=1 // pred_fallthru
      _
    %v88 = vld [vmem:[#allocation2] sm:$0xff]
    %v89 = vld [vmem:[#allocation5] sm:$0xff]
    %v90 = vld [vmem:[#allocation5 + $0x8] sm:$0xff]
    %v91 = vld [vmem:[#allocation5 + $0x10] sm:$0xff]
    %v92 = vld [vmem:[#allocation5 + $0x18] sm:$0xff]
    %v93 = vld [vmem:[#allocation5 + $0x20] sm:$0xff]
    %v94 = vld [vmem:[#allocation5 + $0x28] sm:$0xff]
    %v95 = vld [vmem:[#allocation5 + $0x30] sm:$0xff]
    %v96 = vld [vmem:[#allocation5 + $0x38] sm:$0xff]
    %v97 = vld [vmem:[#allocation5 + $0x40] sm:$0xff]
    %v98 = vld [vmem:[#allocation5 + $0x48] sm:$0xff]
    %v99 = vld [vmem:[#allocation5 + $0x50] sm:$0xff]
    %v100 = vld [vmem:[#allocation5 + $0x58] sm:$0xff]
    %v101 = vld [vmem:[#allocation5 + $0x60] sm:$0xff]
    %v102 = vld [vmem:[#allocation5 + $0x68] sm:$0xff]
    %v103 = vld [vmem:[#allocation5 + $0x70] sm:$0xff]
    %v104 = vld [vmem:[#allocation5 + $0x78] sm:$0xff]
    %v105 = vld [vmem:[%s2] sm:$0x1]
    %v107 = vperm.slane %v105, 0
    %109 = vmatpush.msra.mxu0 %v104
    %110 = vmatpush.msra.mxu0 %v103
    %111 = vmatpush.msra.mxu0 %v102
    %112 = vmatpush.msra.mxu0 %v101
    %113 = vmatpush.msra.mxu0 %v100
    %114 = vmatpush.msra.mxu0 %v99
    %115 = vmatpush.msra.mxu0 %v98
    %116 = vmatpush.msra.mxu0 %v97
    %117 = vmatpush.msra.mxu0 %v96
    %118 = vmatpush.msra.mxu0 %v95
    %119 = vmatpush.msra.mxu0 %v94
    %120 = vmatpush.msra.mxu0 %v93
    %121 = vmatpush.msra.mxu0 %v92
    %122 = vmatpush.msra.mxu0 %v91
    %123 = vmatpush.msra.mxu0 %v90
    %124 = vmatpush.msra.mxu0 %v89
    %125 = vmatmul.f32.gmra.mxu0 %v88
    %v126 = vpop.f32.mrf.mxu0
    %v127 = vadd.f32 %v107, %v126
    %128 = vdwg.mxu0
    %v129 = vmul.f32 %v127, 0.5
    %v130 = vmul.f32 %v127, 0.70710677
    %v131 = vmul.f32 %v130, %v130
    %v132 = vmin.f32 16.0, %v131
    %v133 = vmul.f32 %v132, 2.1237322e-06
    %v134 = vadd.f32 %v133, 0.00028619796
    %v135 = vmul.f32 %v132, %v134
    %v136 = vadd.f32 %v135, 0.0036580483
    %v137 = vmul.f32 %v132, %v136
    %v138 = vadd.f32 %v137, 0.05243302
    %v139 = vmul.f32 %v132, %v138
    %v140 = vadd.f32 %v139, 0.18741608
    %v141 = vmul.f32 %v132, %v140
    %v142 = vadd.f32 %v141, 1.1283791
    %v143 = vmul.f32 %v130, %v142
    %v144 = vmul.f32 %v132, 3.8918573e-05
    %v145 = vadd.f32 %v144, 0.001143296
    %v146 = vmul.f32 %v132, %v145
    %v147 = vadd.f32 %v146, 0.014752088
    %v148 = vmul.f32 %v132, %v147
    %v149 = vadd.f32 %v148, 0.112945676
    %v150 = vmul.f32 %v132, %v149
    %v151 = vadd.f32 %v150, 0.4994258
    %v152 = vmul.f32 %v132, %v151
    %v153 = vadd.f32 %v152, 1.0
    %v154 = vrcp.pop %v153
    %v155 = vmul.f32 %v153, %v154
    %v156 = vsub.f32 1.0, %v155
    %v157 = vmul.f32 %v154, %v156
    %v158 = vadd.f32 %v154, %v157
    %vm159 = vweird.f32 %v153
    %vm160 = vweird.f32 %v154
    %vm161 = vmor %vm159, %vm160
    %v162 = vsel %vm161, %v154, %v158
    %v163 = vand.u32 2147483647, %v153
    %vm164 = vcmp.eq.f32.partialorder %v163, 8.507059e+37
    %v165 = vand.u32 %v153, 2147483648
    %v166 = vor.u32 1.1754944e-38, %v165
    %v167 = vsel %vm164, %v166, %v162
    %v168 = vmul.f32 %v143, %v167
    %v169 = vmin.f32 %v168, 1.0
    %v170 = vmax.f32 %v169, -1.0
    %v171 = vadd.f32 %v170, 1.0
    %v172 = vmul.f32 %v129, %v171
    %v173 = vld [vmem:[#allocation7] sm:$0xff]
    %v174 = vld [vmem:[#allocation7 + $0x8] sm:$0xff]
    %v175 = vld [vmem:[#allocation7 + $0x10] sm:$0xff]
    %v176 = vld [vmem:[#allocation7 + $0x18] sm:$0xff]
    %v177 = vld [vmem:[#allocation7 + $0x20] sm:$0xff]
    %v178 = vld [vmem:[#allocation7 + $0x28] sm:$0xff]
    %v179 = vld [vmem:[#allocation7 + $0x30] sm:$0xff]
    %v180 = vld [vmem:[#allocation7 + $0x38] sm:$0xff]
    %v181 = vld [vmem:[#allocation7 + $0x40] sm:$0xff]
    %v182 = vld [vmem:[#allocation7 + $0x48] sm:$0xff]
    %v183 = vld [vmem:[#allocation7 + $0x50] sm:$0xff]
    %v184 = vld [vmem:[#allocation7 + $0x58] sm:$0xff]
    %v185 = vld [vmem:[#allocation7 + $0x60] sm:$0xff]
    %v186 = vld [vmem:[#allocation7 + $0x68] sm:$0xff]
    %v187 = vld [vmem:[#allocation7 + $0x70] sm:$0xff]
    %v188 = vld [vmem:[#allocation7 + $0x78] sm:$0xff]
    %v189 = vld [vmem:[%s4] sm:$0x1]
    %v191 = vperm.slane %v189, 0
    %193 = vmatpush.msra.mxu0 %v188
    %194 = vmatpush.msra.mxu0 %v187
    %195 = vmatpush.msra.mxu0 %v186
    %196 = vmatpush.msra.mxu0 %v185
    %197 = vmatpush.msra.mxu0 %v184
    %198 = vmatpush.msra.mxu0 %v183
    %199 = vmatpush.msra.mxu0 %v182
    %200 = vmatpush.msra.mxu0 %v181
    %201 = vmatpush.msra.mxu0 %v180
    %202 = vmatpush.msra.mxu0 %v179
    %203 = vmatpush.msra.mxu0 %v178
    %204 = vmatpush.msra.mxu0 %v177
    %205 = vmatpush.msra.mxu0 %v176
    %206 = vmatpush.msra.mxu0 %v175
    %207 = vmatpush.msra.mxu0 %v174
    %208 = vmatpush.msra.mxu0 %v173
    %209 = vmatmul.f32.gmra.mxu0 %v172
    %v210 = vpop.f32.mrf.mxu0
    %v211 = vadd.f32 %v191, %v210
    %212 = vdwg.mxu0
    %v213 = vmul.f32 %v211, 0.5
    %v214 = vmul.f32 %v211, 0.70710677
    %v215 = vmul.f32 %v214, %v214
    %v216 = vmin.f32 16.0, %v215
    %v217 = vmul.f32 %v216, 2.1237322e-06
    %v218 = vadd.f32 %v217, 0.00028619796
    %v219 = vmul.f32 %v216, %v218
    %v220 = vadd.f32 %v219, 0.0036580483
    %v221 = vmul.f32 %v216, %v220
    %v222 = vadd.f32 %v221, 0.05243302
    %v223 = vmul.f32 %v216, %v222
    %v224 = vadd.f32 %v223, 0.18741608
    %v225 = vmul.f32 %v216, %v224
    %v226 = vadd.f32 %v225, 1.1283791
    %v227 = vmul.f32 %v214, %v226
    %v228 = vmul.f32 %v216, 3.8918573e-05
    %v229 = vadd.f32 %v228, 0.001143296
    %v230 = vmul.f32 %v216, %v229
    %v231 = vadd.f32 %v230, 0.014752088
    %v232 = vmul.f32 %v216, %v231
    %v233 = vadd.f32 %v232, 0.112945676
    %v234 = vmul.f32 %v216, %v233
    %v235 = vadd.f32 %v234, 0.4994258
    %v236 = vmul.f32 %v216, %v235
    %v237 = vadd.f32 %v236, 1.0
    %v238 = vrcp.pop %v237
    %v239 = vmul.f32 %v237, %v238
    %v240 = vsub.f32 1.0, %v239
    %v241 = vmul.f32 %v238, %v240
    %v242 = vadd.f32 %v238, %v241
    %vm243 = vweird.f32 %v237
    %vm244 = vweird.f32 %v238
    %vm245 = vmor %vm243, %vm244
    %v246 = vsel %vm245, %v238, %v242
    %v247 = vand.u32 2147483647, %v237
    %vm248 = vcmp.eq.f32.partialorder %v247, 8.507059e+37
    %v249 = vand.u32 %v237, 2147483648
    %v250 = vor.u32 1.1754944e-38, %v249
    %v251 = vsel %vm248, %v250, %v246
    %v252 = vmul.f32 %v227, %v251
    %v253 = vmin.f32 %v252, 1.0
    %v254 = vmax.f32 %v253, -1.0
    %v255 = vadd.f32 %v254, 1.0
    %v256 = vmul.f32 %v213, %v255
    %v257 = vld [vmem:[#allocation8] sm:$0xff]
    %v258 = vld [vmem:[#allocation8 + $0x8] sm:$0xff]
    %v259 = vld [vmem:[#allocation8 + $0x10] sm:$0xff]
    %v260 = vld [vmem:[#allocation8 + $0x18] sm:$0xff]
    %v261 = vld [vmem:[#allocation8 + $0x20] sm:$0xff]
    %v262 = vld [vmem:[#allocation8 + $0x28] sm:$0xff]
    %v263 = vld [vmem:[#allocation8 + $0x30] sm:$0xff]
    %v264 = vld [vmem:[#allocation8 + $0x38] sm:$0xff]
    %v265 = vld [vmem:[#allocation8 + $0x40] sm:$0xff]
    %v266 = vld [vmem:[#allocation8 + $0x48] sm:$0xff]
    %v267 = vld [vmem:[#allocation8 + $0x50] sm:$0xff]
    %v268 = vld [vmem:[#allocation8 + $0x58] sm:$0xff]
    %v269 = vld [vmem:[#allocation8 + $0x60] sm:$0xff]
    %v270 = vld [vmem:[#allocation8 + $0x68] sm:$0xff]
    %v271 = vld [vmem:[#allocation8 + $0x70] sm:$0xff]
    %v272 = vld [vmem:[#allocation8 + $0x78] sm:$0xff]
    %v273 = vld [vmem:[%s6] sm:$0x1]
    %v275 = vperm.slane %v273, 0
    %277 = vmatpush.msra.mxu0 %v272
    %278 = vmatpush.msra.mxu0 %v271
    %279 = vmatpush.msra.mxu0 %v270
    %280 = vmatpush.msra.mxu0 %v269
    %281 = vmatpush.msra.mxu0 %v268
    %282 = vmatpush.msra.mxu0 %v267
    %283 = vmatpush.msra.mxu0 %v266
    %284 = vmatpush.msra.mxu0 %v265
    %285 = vmatpush.msra.mxu0 %v264
    %286 = vmatpush.msra.mxu0 %v263
    %287 = vmatpush.msra.mxu0 %v262
    %288 = vmatpush.msra.mxu0 %v261
    %289 = vmatpush.msra.mxu0 %v260
    %290 = vmatpush.msra.mxu0 %v259
    %291 = vmatpush.msra.mxu0 %v258
    %292 = vmatpush.msra.mxu0 %v257
    %293 = vmatmul.f32.gmra.mxu0 %v256
    %v294 = vpop.f32.mrf.mxu0
    %v295 = vadd.f32 %v275, %v294
    %296 = vdwg.mxu0
    %297 = vst [vmem:[#allocation10] sm:$0xff] %v295
    // Predicated region
    $region46: #{tpu_custom_call.1} parent=1 // pred_check
      _
    $region47: #{tpu_custom_call.1} parent=1 // pred_check_branch
      %299 = sbr.rel (0) target = $region49
    $region48: #{tpu_custom_call.1} parent=1 // pred_region
      %301 = vsyncadd [#allocation4], 0
      %s303 = sshll.u32 [#allocation10], 4
      %s304 = int_to_ptr.vmem [resolvable:$true] %s303
      %s305 = sshll.u32 %s7, 4
      %s306 = int_to_ptr.hbm [resolvable:$true] %s305
      %308 = dma.vmem_to_hbm [thread:$0]  %s304, 128, %s306, [#allocation4]
    $region49: #{tpu_custom_call.1} parent=1 // pred_fallthru
      _
    // Predicated region
    $region50: #{tpu_custom_call.1} parent=1 // pred_check
      _
    $region51: #{tpu_custom_call.1} parent=1 // pred_check_branch
      %310 = sbr.rel (0) target = $region53
    $region52: #{tpu_custom_call.1} parent=1 // pred_region
      %312 = dma.done [#allocation4], 128
    $region53: #{tpu_custom_call.1} parent=1 // pred_fallthru
      _
    %313 = vsyncpa [#allocation3], 1
    %314 = vsyncpa [#allocation6], 1
    %315 = vsyncpa [#allocation9], 1
    %316 = vsyncpa [#allocation4], 1

// kernel: tpu_custom_call.1
$region0: #{tpu_custom_call.1}
  #allocation0 [shape = 'u32[]', space=smem, size = 0x4, offset = 0x4, fixed_abs, tag = 'smem constant byte address 0x4 - core index']
  #allocation1 [shape = 'u32[72,128]{1,0:T(1,128)}', space=vmem, size = 0x9000, scoped, tag = 'internal scratch']
  %s0 = inlined_call_operand.hbm [shape: f32[8,128], index: 0, kind: input, shape index: {}]
  %s1 = inlined_call_operand.hbm [shape: f32[128,128], index: 1, kind: input, shape index: {}]
  %s2 = inlined_call_operand.vmem [shape: f32[1,128], index: 2, kind: input, shape index: {}]
  %s3 = inlined_call_operand.hbm [shape: f32[1,128,128], index: 3, kind: input, shape index: {}]
  %s4 = inlined_call_operand.vmem [shape: f32[1,1,128], index: 4, kind: input, shape index: {}]
  %s5 = inlined_call_operand.hbm [shape: f32[128,128], index: 5, kind: input, shape index: {}]
  %s6 = inlined_call_operand.vmem [shape: f32[1,128], index: 6, kind: input, shape index: {}]
  %s7 = inlined_call_operand.hbm [shape: f32[8,128], index: 7, kind: output, shape index: {}]
  %s8 = sld [smem:[#allocation0]]
  $region54: #{tpu_custom_call.1} parent=0
    _
  %s10 = ssub.s32 1, %s8
  %s11 = scalar_select 0, %s10, %s8
  $region1: #{tpu_custom_call.1} parent=0
    #allocation2 [shape = 'u8[4096]{0}', space=vmem, size = 0x1000, scoped, tag = 'input window, operand 0, single buffered']
    #allocation3 [shape = 's32[1]{0}', space=sflag, size = 0x4, scoped, tag = 'scoped memory for tpu_custom_call.1']
    #allocation4 [shape = 's32[1]{0}', space=sflag, size = 0x4, scoped, tag = 'scoped memory for tpu_custom_call.1']
    #allocation5 [shape = 'u8[65536]{0}', space=vmem, size = 0x10000, scoped, tag = 'input window, operand 1, single buffered']
    #allocation6 [shape = 's32[1]{0}', space=sflag, size = 0x4, scoped, tag = 'scoped memory for tpu_custom_call.1']
    #allocation7 [shape = 'u8[65536]{0}', space=vmem, size = 0x10000, scoped, tag = 'input window, operand 3, single buffered']
    #allocation8 [shape = 'u8[65536]{0}', space=vmem, size = 0x10000, scoped, tag = 'input window, operand 5, single buffered']
    #allocation9 [shape = 's32[1]{0}', space=sflag, size = 0x4, scoped, tag = 'scoped memory for tpu_custom_call.1']
    #allocation10 [shape = 'u8[4096]{0}', space=vmem, size = 0x1000, scoped, tag = 'output window, operand 0, single buffered']
    %12 = vsyncpa [#allocation3], 0
    %13 = vsyncpa [#allocation6], 0
    %14 = vsyncpa [#allocation9], 0
    %15 = vsyncpa [#allocation4], 0
    // Predicated region
    $region2: #{tpu_custom_call.1} parent=1 // pred_check
      _
    $region3: #{tpu_custom_call.1} parent=1 // pred_check_branch
      %17 = sbr.rel (0) target = $region5
    $region4: #{tpu_custom_call.1} parent=1 // pred_region
      %19 = vsyncadd [#allocation3], 0
      %s21 = sshll.u32 %s0, 4
      %s22 = int_to_ptr.hbm [resolvable:$true] %s21
      %s23 = sshll.u32 [#allocation2], 4
      %s24 = int_to_ptr.vmem [resolvable:$true] %s23
      %26 = dma.hbm_to_vmem [thread:$0]  %s22, 128, %s24, [#allocation3]
    $region5: #{tpu_custom_call.1} parent=1 // pred_fallthru
      _
    // Predicated region
    $region6: #{tpu_custom_call.1} parent=1 // pred_check
      _
    $region7: #{tpu_custom_call.1} parent=1 // pred_check_branch
      %28 = sbr.rel (0) target = $region9
    $region8: #{tpu_custom_call.1} parent=1 // pred_region
      %30 = vsyncadd [#allocation6], 0
      %s31 = sshll.u32 %s1, 4
      %s32 = int_to_ptr.hbm [resolvable:$true] %s31
      %s33 = sshll.u32 [#allocation5], 4
      %s34 = int_to_ptr.vmem [resolvable:$true] %s33
      %39 = dma.hbm_to_vmem [thread:$0]  %s32, 2048, %s34, [#allocation6], 128, 128, 8
    $region9: #{tpu_custom_call.1} parent=1 // pred_fallthru
      _
    // Predicated region
    $region10: #{tpu_custom_call.1} parent=1 // pred_check
      _
    $region11: #{tpu_custom_call.1} parent=1 // pred_check_branch
      %41 = sbr.rel (0) target = $region13
    $region12: #{tpu_custom_call.1} parent=1 // pred_region
      _
    $region13: #{tpu_custom_call.1} parent=1 // pred_fallthru
      _
    // Predicated region
    $region14: #{tpu_custom_call.1} parent=1 // pred_check
      _
    $region15: #{tpu_custom_call.1} parent=1 // pred_check_branch
      %43 = sbr.rel (0) target = $region17
    $region16: #{tpu_custom_call.1} parent=1 // pred_region
      %45 = vsyncadd [#allocation6], 0
      %s46 = sshll.u32 %s3, 4
      %s47 = int_to_ptr.hbm [resolvable:$true] %s46
      %s48 = sshll.u32 [#allocation7], 4
      %s49 = int_to_ptr.vmem [resolvable:$true] %s48
      %54 = dma.hbm_to_vmem [thread:$0]  %s47, 2048, %s49, [#allocation6], 128, 128, 8
    $region17: #{tpu_custom_call.1} parent=1 // pred_fallthru
      _
    // Predicated region
    $region18: #{tpu_custom_call.1} parent=1 // pred_check
      _
    $region19: #{tpu_custom_call.1} parent=1 // pred_check_branch
      %56 = sbr.rel (0) target = $region21
    $region20: #{tpu_custom_call.1} parent=1 // pred_region
      _
    $region21: #{tpu_custom_call.1} parent=1 // pred_fallthru
      _
    // Predicated region
    $region22: #{tpu_custom_call.1} parent=1 // pred_check
      _
    $region23: #{tpu_custom_call.1} parent=1 // pred_check_branch
      %58 = sbr.rel (0) target = $region25
    $region24: #{tpu_custom_call.1} parent=1 // pred_region
      %60 = vsyncadd [#allocation9], 0
      %s61 = sshll.u32 %s5, 4
      %s62 = int_to_ptr.hbm [resolvable:$true] %s61
      %s63 = sshll.u32 [#allocation8], 4
      %s64 = int_to_ptr.vmem [resolvable:$true] %s63
      %69 = dma.hbm_to_vmem [thread:$0]  %s62, 2048, %s64, [#allocation9], 128, 128, 8
    $region25: #{tpu_custom_call.1} parent=1 // pred_fallthru
      _
    // Predicated region
    $region26: #{tpu_custom_call.1} parent=1 // pred_check
      _
    $region27: #{tpu_custom_call.1} parent=1 // pred_check_branch
      %71 = sbr.rel (0) target = $region29
    $region28: #{tpu_custom_call.1} parent=1 // pred_region
      _
    $region29: #{tpu_custom_call.1} parent=1 // pred_fallthru
      _
    // Predicated region
    $region30: #{tpu_custom_call.1} parent=1 // pred_check
      _
    $region31: #{tpu_custom_call.1} parent=1 // pred_check_branch
      %73 = sbr.rel (0) target = $region33
    $region32: #{tpu_custom_call.1} parent=1 // pred_region
      %75 = dma.done [#allocation3], 128
    $region33: #{tpu_custom_call.1} parent=1 // pred_fallthru
      _
    // Predicated region
    $region34: #{tpu_custom_call.1} parent=1 // pred_check
      _
    $region35: #{tpu_custom_call.1} parent=1 // pred_check_branch
      %77 = sbr.rel (0) target = $region37
    $region36: #{tpu_custom_call.1} parent=1 // pred_region
      %79 = dma.done [#allocation6], 2048
    $region37: #{tpu_custom_call.1} parent=1 // pred_fallthru
      _
    // Predicated region
    $region38: #{tpu_custom_call.1} parent=1 // pred_check
      _
    $region39: #{tpu_custom_call.1} parent=1 // pred_check_branch
      %81 = sbr.rel (0) target = $region41
    $region40: #{tpu_custom_call.1} parent=1 // pred_region
      %83 = dma.done [#allocation6], 2048
    $region41: #{tpu_custom_call.1} parent=1 // pred_fallthru
      _
    // Predicated region
    $region42: #{tpu_custom_call.1} parent=1 // pred_check
      _
    $region43: #{tpu_custom_call.1} parent=1 // pred_check_branch
      %85 = sbr.rel (0) target = $region45
    $region44: #{tpu_custom_call.1} parent=1 // pred_region
      %87 = dma.done [#allocation9], 2048
    $region45: #{tpu_custom_call.1} parent=1 // pred_fallthru
      _
    %v88 = vld [vmem:[#allocation2] sm:$0xff]
    %v89 = vld [vmem:[#allocation5] sm:$0xff]
    %v90 = vld [vmem:[#allocation5 + $0x8] sm:$0xff]
    %v91 = vld [vmem:[#allocation5 + $0x10] sm:$0xff]
    %v92 = vld [vmem:[#allocation5 + $0x18] sm:$0xff]
    %v93 = vld [vmem:[#allocation5 + $0x20] sm:$0xff]
    %v94 = vld [vmem:[#allocation5 + $0x28] sm:$0xff]
    %v95 = vld [vmem:[#allocation5 + $0x30] sm:$0xff]
    %v96 = vld [vmem:[#allocation5 + $0x38] sm:$0xff]
    %v97 = vld [vmem:[#allocation5 + $0x40] sm:$0xff]
    %v98 = vld [vmem:[#allocation5 + $0x48] sm:$0xff]
    %v99 = vld [vmem:[#allocation5 + $0x50] sm:$0xff]
    %v100 = vld [vmem:[#allocation5 + $0x58] sm:$0xff]
    %v101 = vld [vmem:[#allocation5 + $0x60] sm:$0xff]
    %v102 = vld [vmem:[#allocation5 + $0x68] sm:$0xff]
    %v103 = vld [vmem:[#allocation5 + $0x70] sm:$0xff]
    %v104 = vld [vmem:[#allocation5 + $0x78] sm:$0xff]
    %v105 = vld [vmem:[%s2] sm:$0x1]
    %v107 = vperm.slane %v105, 0
    %109 = vmatpush.msra.mxu0 %v104
    %110 = vmatpush.msra.mxu0 %v103
    %111 = vmatpush.msra.mxu0 %v102
    %112 = vmatpush.msra.mxu0 %v101
    %113 = vmatpush.msra.mxu0 %v100
    %114 = vmatpush.msra.mxu0 %v99
    %115 = vmatpush.msra.mxu0 %v98
    %116 = vmatpush.msra.mxu0 %v97
    %117 = vmatpush.msra.mxu0 %v96
    %118 = vmatpush.msra.mxu0 %v95
    %119 = vmatpush.msra.mxu0 %v94
    %120 = vmatpush.msra.mxu0 %v93
    %121 = vmatpush.msra.mxu0 %v92
    %122 = vmatpush.msra.mxu0 %v91
    %123 = vmatpush.msra.mxu0 %v90
    %124 = vmatpush.msra.mxu0 %v89
    %125 = vmatmul.f32.gmra.mxu0 %v88
    %v126 = vpop.f32.mrf.mxu0
    %v127 = vadd.f32 %v107, %v126
    %128 = vdwg.mxu0
    %v129 = vmul.f32 %v127, 0.5
    %v130 = vmul.f32 %v127, 0.70710677
    %v131 = vmul.f32 %v130, %v130
    %v132 = vmin.f32 16.0, %v131
    %v133 = vmul.f32 %v132, 2.1237322e-06
    %v134 = vadd.f32 %v133, 0.00028619796
    %v135 = vmul.f32 %v132, %v134
    %v136 = vadd.f32 %v135, 0.0036580483
    %v137 = vmul.f32 %v132, %v136
    %v138 = vadd.f32 %v137, 0.05243302
    %v139 = vmul.f32 %v132, %v138
    %v140 = vadd.f32 %v139, 0.18741608
    %v141 = vmul.f32 %v132, %v140
    %v142 = vadd.f32 %v141, 1.1283791
    %v143 = vmul.f32 %v130, %v142
    %v144 = vmul.f32 %v132, 3.8918573e-05
    %v145 = vadd.f32 %v144, 0.001143296
    %v146 = vmul.f32 %v132, %v145
    %v147 = vadd.f32 %v146, 0.014752088
    %v148 = vmul.f32 %v132, %v147
    %v149 = vadd.f32 %v148, 0.112945676
    %v150 = vmul.f32 %v132, %v149
    %v151 = vadd.f32 %v150, 0.4994258
    %v152 = vmul.f32 %v132, %v151
    %v153 = vadd.f32 %v152, 1.0
    %v154 = vrcp.pop %v153
    %v155 = vmul.f32 %v153, %v154
    %v156 = vsub.f32 1.0, %v155
    %v157 = vmul.f32 %v154, %v156
    %v158 = vadd.f32 %v154, %v157
    %vm159 = vweird.f32 %v153
    %vm160 = vweird.f32 %v154
    %vm161 = vmor %vm159, %vm160
    %v162 = vsel %vm161, %v154, %v158
    %v163 = vand.u32 2147483647, %v153
    %vm164 = vcmp.eq.f32.partialorder %v163, 8.507059e+37
    %v165 = vand.u32 %v153, 2147483648
    %v166 = vor.u32 1.1754944e-38, %v165
    %v167 = vsel %vm164, %v166, %v162
    %v168 = vmul.f32 %v143, %v167
    %v169 = vmin.f32 %v168, 1.0
    %v170 = vmax.f32 %v169, -1.0
    %v171 = vadd.f32 %v170, 1.0
    %v172 = vmul.f32 %v129, %v171
    %v173 = vld [vmem:[#allocation7] sm:$0xff]
    %v174 = vld [vmem:[#allocation7 + $0x8] sm:$0xff]
    %v175 = vld [vmem:[#allocation7 + $0x10] sm:$0xff]
    %v176 = vld [vmem:[#allocation7 + $0x18] sm:$0xff]
    %v177 = vld [vmem:[#allocation7 + $0x20] sm:$0xff]
    %v178 = vld [vmem:[#allocation7 + $0x28] sm:$0xff]
    %v179 = vld [vmem:[#allocation7 + $0x30] sm:$0xff]
    %v180 = vld [vmem:[#allocation7 + $0x38] sm:$0xff]
    %v181 = vld [vmem:[#allocation7 + $0x40] sm:$0xff]
    %v182 = vld [vmem:[#allocation7 + $0x48] sm:$0xff]
    %v183 = vld [vmem:[#allocation7 + $0x50] sm:$0xff]
    %v184 = vld [vmem:[#allocation7 + $0x58] sm:$0xff]
    %v185 = vld [vmem:[#allocation7 + $0x60] sm:$0xff]
    %v186 = vld [vmem:[#allocation7 + $0x68] sm:$0xff]
    %v187 = vld [vmem:[#allocation7 + $0x70] sm:$0xff]
    %v188 = vld [vmem:[#allocation7 + $0x78] sm:$0xff]
    %v189 = vld [vmem:[%s4] sm:$0x1]
    %v191 = vperm.slane %v189, 0
    %193 = vmatpush.msra.mxu0 %v188
    %194 = vmatpush.msra.mxu0 %v187
    %195 = vmatpush.msra.mxu0 %v186
    %196 = vmatpush.msra.mxu0 %v185
    %197 = vmatpush.msra.mxu0 %v184
    %198 = vmatpush.msra.mxu0 %v183
    %199 = vmatpush.msra.mxu0 %v182
    %200 = vmatpush.msra.mxu0 %v181
    %201 = vmatpush.msra.mxu0 %v180
    %202 = vmatpush.msra.mxu0 %v179
    %203 = vmatpush.msra.mxu0 %v178
    %204 = vmatpush.msra.mxu0 %v177
    %205 = vmatpush.msra.mxu0 %v176
    %206 = vmatpush.msra.mxu0 %v175
    %207 = vmatpush.msra.mxu0 %v174
    %208 = vmatpush.msra.mxu0 %v173
    %209 = vmatmul.f32.gmra.mxu0 %v172
    %v210 = vpop.f32.mrf.mxu0
    %v211 = vadd.f32 %v191, %v210
    %212 = vdwg.mxu0
    %v213 = vmul.f32 %v211, 0.5
    %v214 = vmul.f32 %v211, 0.70710677
    %v215 = vmul.f32 %v214, %v214
    %v216 = vmin.f32 16.0, %v215
    %v217 = vmul.f32 %v216, 2.1237322e-06
    %v218 = vadd.f32 %v217, 0.00028619796
    %v219 = vmul.f32 %v216, %v218
    %v220 = vadd.f32 %v219, 0.0036580483
    %v221 = vmul.f32 %v216, %v220
    %v222 = vadd.f32 %v221, 0.05243302
    %v223 = vmul.f32 %v216, %v222
    %v224 = vadd.f32 %v223, 0.18741608
    %v225 = vmul.f32 %v216, %v224
    %v226 = vadd.f32 %v225, 1.1283791
    %v227 = vmul.f32 %v214, %v226
    %v228 = vmul.f32 %v216, 3.8918573e-05
    %v229 = vadd.f32 %v228, 0.001143296
    %v230 = vmul.f32 %v216, %v229
    %v231 = vadd.f32 %v230, 0.014752088
    %v232 = vmul.f32 %v216, %v231
    %v233 = vadd.f32 %v232, 0.112945676
    %v234 = vmul.f32 %v216, %v233
    %v235 = vadd.f32 %v234, 0.4994258
    %v236 = vmul.f32 %v216, %v235
    %v237 = vadd.f32 %v236, 1.0
    %v238 = vrcp.pop %v237
    %v239 = vmul.f32 %v237, %v238
    %v240 = vsub.f32 1.0, %v239
    %v241 = vmul.f32 %v238, %v240
    %v242 = vadd.f32 %v238, %v241
    %vm243 = vweird.f32 %v237
    %vm244 = vweird.f32 %v238
    %vm245 = vmor %vm243, %vm244
    %v246 = vsel %vm245, %v238, %v242
    %v247 = vand.u32 2147483647, %v237
    %vm248 = vcmp.eq.f32.partialorder %v247, 8.507059e+37
    %v249 = vand.u32 %v237, 2147483648
    %v250 = vor.u32 1.1754944e-38, %v249
    %v251 = vsel %vm248, %v250, %v246
    %v252 = vmul.f32 %v227, %v251
    %v253 = vmin.f32 %v252, 1.0
    %v254 = vmax.f32 %v253, -1.0
    %v255 = vadd.f32 %v254, 1.0
    %v256 = vmul.f32 %v213, %v255
    %v257 = vld [vmem:[#allocation8] sm:$0xff]
    %v258 = vld [vmem:[#allocation8 + $0x8] sm:$0xff]
    %v259 = vld [vmem:[#allocation8 + $0x10] sm:$0xff]
    %v260 = vld [vmem:[#allocation8 + $0x18] sm:$0xff]
    %v261 = vld [vmem:[#allocation8 + $0x20] sm:$0xff]
    %v262 = vld [vmem:[#allocation8 + $0x28] sm:$0xff]
    %v263 = vld [vmem:[#allocation8 + $0x30] sm:$0xff]
    %v264 = vld [vmem:[#allocation8 + $0x38] sm:$0xff]
    %v265 = vld [vmem:[#allocation8 + $0x40] sm:$0xff]
    %v266 = vld [vmem:[#allocation8 + $0x48] sm:$0xff]
    %v267 = vld [vmem:[#allocation8 + $0x50] sm:$0xff]
    %v268 = vld [vmem:[#allocation8 + $0x58] sm:$0xff]
    %v269 = vld [vmem:[#allocation8 + $0x60] sm:$0xff]
    %v270 = vld [vmem:[#allocation8 + $0x68] sm:$0xff]
    %v271 = vld [vmem:[#allocation8 + $0x70] sm:$0xff]
    %v272 = vld [vmem:[#allocation8 + $0x78] sm:$0xff]
    %v273 = vld [vmem:[%s6] sm:$0x1]
    %v275 = vperm.slane %v273, 0
    %277 = vmatpush.msra.mxu0 %v272
    %278 = vmatpush.msra.mxu0 %v271
    %279 = vmatpush.msra.mxu0 %v270
    %280 = vmatpush.msra.mxu0 %v269
    %281 = vmatpush.msra.mxu0 %v268
    %282 = vmatpush.msra.mxu0 %v267
    %283 = vmatpush.msra.mxu0 %v266
    %284 = vmatpush.msra.mxu0 %v265
    %285 = vmatpush.msra.mxu0 %v264
    %286 = vmatpush.msra.mxu0 %v263
    %287 = vmatpush.msra.mxu0 %v262
    %288 = vmatpush.msra.mxu0 %v261
    %289 = vmatpush.msra.mxu0 %v260
    %290 = vmatpush.msra.mxu0 %v259
    %291 = vmatpush.msra.mxu0 %v258
    %292 = vmatpush.msra.mxu0 %v257
    %293 = vmatmul.f32.gmra.mxu0 %v256
    %v294 = vpop.f32.mrf.mxu0
    %v295 = vadd.f32 %v275, %v294
    %296 = vdwg.mxu0
    %297 = vst [vmem:[#allocation10] sm:$0xff] %v295
    // Predicated region
    $region46: #{tpu_custom_call.1} parent=1 // pred_check
      _
    $region47: #{tpu_custom_call.1} parent=1 // pred_check_branch
      %299 = sbr.rel (0) target = $region49
    $region48: #{tpu_custom_call.1} parent=1 // pred_region
      %301 = vsyncadd [#allocation4], 0
      %s303 = sshll.u32 [#allocation10], 4
      %s304 = int_to_ptr.vmem [resolvable:$true] %s303
      %s305 = sshll.u32 %s7, 4
      %s306 = int_to_ptr.hbm [resolvable:$true] %s305
      %308 = dma.vmem_to_hbm [thread:$0]  %s304, 128, %s306, [#allocation4]
    $region49: #{tpu_custom_call.1} parent=1 // pred_fallthru
      _
    // Predicated region
    $region50: #{tpu_custom_call.1} parent=1 // pred_check
      _
    $region51: #{tpu_custom_call.1} parent=1 // pred_check_branch
      %310 = sbr.rel (0) target = $region53
    $region52: #{tpu_custom_call.1} parent=1 // pred_region
      %312 = dma.done [#allocation4], 128
    $region53: #{tpu_custom_call.1} parent=1 // pred_fallthru
      _
    %313 = vsyncpa [#allocation3], 1
    %314 = vsyncpa [#allocation6], 1
    %315 = vsyncpa [#allocation9], 1
    %316 = vsyncpa [#allocation4], 1

</llo_original>
